<compile_context>
chip_gen: v7x
topology: tpu7x:2x2x1
jax: 0.10.0
libtpu: 0.0.40
codegen_flags: <defaults>
</compile_context>

<pallas_src>
import functools

import numpy as np
import jax
import jax.numpy as jnp
from jax import lax
from jax.experimental import pallas as pl
from jax.experimental.pallas import tpu as pltpu

LABEL_PAD = -1234567.0   # sentinel label for padded anchor rows (never equals a real class id)
MIN_A_PAD = 128          # minimum anchor bucket (lane / MXU friendly)
LOG_CLAMP = 1e-30        # guards log(0); only differs where the f32 reference itself is +/-inf
NEG_BIG = -1e30          # additive bias for padded contrast rows


# ----------------------------------------------------------------------------
# Pallas kernel: the `_contrastive` hot path.
# Orientation: logits is (A_pad, TILE_M) = contrast rows on sublanes, this tile's anchors on
# lanes.  All per-anchor reductions are axis=0 (mostly VPU adds across sublane tiles + one small
# XLU fold), and the per-anchor loss comes out as a lane-dense (1, TILE_M) row.
# ----------------------------------------------------------------------------
def _make_contrastive_kernel(temperature, base_temperature):
    inv_t = 1.0 / float(temperature)
    scale = -(float(temperature) / float(base_temperature))

    def kernel(x_all_ref, x_t_ref, y_all_ref, bias_ref, y_tile_ref, v_tile_ref,
               diag_ref, out_ref):
        # MXU: bf16 x bf16 -> f32, canonical [M,K] x [K,N]:
        #   x_all (A_pad, D) resident contrast rows, x_t (D, TILE_M) this tile's anchors.
        logits = lax.dot_general(
            x_all_ref[...], x_t_ref[...],
            dimension_numbers=(((1,), (0,)), ((), ())),
            preferred_element_type=jnp.float32) * inv_t + bias_ref[...]      # (A, TM)

        v_tile = v_tile_ref[...]                                             # (1, TM)

        # Column-max shift (matches torch.max over the contrast dim); padded contrast rows carry
        # -1e30 from the additive bias so they can never win the max.  Guard pad anchors.
        col_max = jnp.max(logits, axis=0, keepdims=True)
        col_max = jnp.where(v_tile > 0.5, col_max, 0.0)
        shifted = logits - col_max
        e = jnp.exp(shifted)                              # padded contrast rows exp to exactly 0

        # positives mask incl. the self/diagonal term (removed analytically below).  No *v_col:
        # LABEL_PAD never equals a real class, and pad-anchor lanes (where it does match pad rows)
        # stay finite (|sum| <~ a_pad * 1e30 << f32 max) and are zeroed by v_tile at the end.
        eq = (y_all_ref[...] == y_tile_ref[...]).astype(jnp.float32)         # (A, TM)

        # neg_sum = sum(exp * (label != anchor_label)); padded rows already contribute 0 to e_all.
        e_all = jnp.sum(e, axis=0, keepdims=True)
        e_pos = jnp.sum(e * eq, axis=0, keepdims=True)
        neg_sum = e_all - e_pos

        # log_prob = logits - log(exp(logits) + neg_sum); clamp guards exp-underflow corner cases.
        log_prob = shifted - jnp.log(jnp.maximum(e + neg_sum, jnp.float32(LOG_CLAMP)))

        # Analytic diagonal removal; diag_logits = ||x_i||^2 / T precomputed outside the kernel.
        diag_shift = diag_ref[...] - col_max
        diag_lp = diag_shift - jnp.log(
            jnp.maximum(jnp.exp(diag_shift) + neg_sum, jnp.float32(LOG_CLAMP)))

        pos_cnt = jnp.sum(eq, axis=0, keepdims=True) - v_tile
        numer = jnp.sum(eq * log_prob, axis=0, keepdims=True) - v_tile * diag_lp

        # Guard anchors with zero positives (reference would 0/0 -> NaN; treat as 0 contribution).
        has_pos = pos_cnt > 0.5
        mean_lp = jnp.where(has_pos, numer / jnp.where(has_pos, pos_cnt, 1.0), 0.0)

        # Per-anchor loss, lane-dense; padded anchors contribute exactly 0. Mean done in wrapper.
        out_ref[...] = scale * mean_lp * v_tile

    return kernel


@functools.lru_cache(maxsize=None)
def _build_contrastive_fn(a_pad, d_pad, tile_m, temperature, base_temperature):
    """Compile (once per shape bucket) a jitted fn: (x_bf16, y_vec, valid_vec, count) -> loss."""
    num_tiles = a_pad // tile_m
    kernel = _make_contrastive_kernel(temperature, base_temperature)

    # VMEM budget derived from actual block + temporary sizes (double-buffered blocks, ~8 live
    # (a_pad, tile_m) f32 temporaries), with 2x headroom, clamped to sane bounds.
    temp_bytes = 8 * a_pad * tile_m * 4
    block_bytes = 2 * (a_pad * d_pad * 2 + d_pad * tile_m * 2 + 2 * a_pad * 4 + 5 * tile_m * 4)
    vmem_limit = int(min(112 << 20, max(16 << 20, 2 * (temp_bytes + block_bytes))))

    # TODO(synk): when the queue/memory-bank path lands, single-buffer the constant-index
    # resident blocks (pipeline_mode=pl.Buffered(1)) and re-budget for v7x's 64 MiB VMEM.
    pcall = pl.pallas_call(
        kernel,
        out_shape=jax.ShapeDtypeStruct((1, a_pad), jnp.float32),
        grid_spec=pltpu.PrefetchScalarGridSpec(
            num_scalar_prefetch=0,
            grid=(num_tiles,),
            in_specs=[
                pl.BlockSpec((a_pad, d_pad), lambda i: (0, 0)),   # resident contrast rows (bf16)
                pl.BlockSpec((d_pad, tile_m), lambda i: (0, i)),  # this tile's anchors, [K, N]
                pl.BlockSpec((a_pad, 1), lambda i: (0, 0)),       # contrast labels (column)
                pl.BlockSpec((a_pad, 1), lambda i: (0, 0)),       # additive col bias {0, -1e30}
                pl.BlockSpec((1, tile_m), lambda i: (0, i)),      # anchor labels (row)
                pl.BlockSpec((1, tile_m), lambda i: (0, i)),      # anchor valid (row)
                pl.BlockSpec((1, tile_m), lambda i: (0, i)),      # precomputed diag logits (row)
            ],
            out_specs=pl.BlockSpec((1, tile_m), lambda i: (0, i)),
        ),
        compiler_params=pltpu.CompilerParams(
            dimension_semantics=("parallel",),
            vmem_limit_bytes=vmem_limit,
        ),
    )

    inv_t = 1.0 / float(temperature)

    def fn(x_bf, y_vec, valid_vec, count):
        # Tiny on-device prep fused into the same executable (no extra f32 feature upload):
        x_t = x_bf.T                                                     # (D, A_pad) bf16
        xf = x_bf.astype(jnp.float32)
        diag = (jnp.sum(xf * xf, axis=1) * inv_t).reshape(1, a_pad)      # hoisted diagonal term
        y_all = y_vec.reshape(a_pad, 1)
        y_row = y_vec.reshape(1, a_pad)
        v_row = valid_vec.reshape(1, a_pad)
        col_bias = (jnp.float32(NEG_BIG) * (1.0 - valid_vec)).reshape(a_pad, 1)
        per_anchor = pcall(x_bf, x_t, y_all, col_bias, y_row, v_row, diag)
        # `.mean()` over real anchors; padded lanes already contribute exactly 0.
        return jnp.sum(per_anchor) / count

    return jax.jit(fn)


def contrastive_loss_pallas(anchor_feat, anchor_y, temperature, base_temperature):
    """anchor_feat: (A, D) float, anchor_y: (A,) float -> scalar loss (jnp.float32)."""
    anchor_feat = np.asarray(anchor_feat, dtype=np.float32)
    anchor_y = np.asarray(anchor_y, dtype=np.float32)
    a, d = anchor_feat.shape

    # Fixed power-of-2 anchor buckets -> few distinct compile shapes (cached above).
    a_pad = max(MIN_A_PAD, int(pl.next_power_of_2(a)))
    d_pad = max(16, -(-d // 16) * 16)                 # bf16 sublane multiple only (no 128 pad)
    tile_m = max(128, min(256, a_pad // 2))           # >=2 grid steps whenever a_pad > 128 (v7x)

    x = np.zeros((a_pad, d_pad), np.float32)
    x[:a, :d] = anchor_feat
    y = np.full((a_pad,), LABEL_PAD, np.float32)
    y[:a] = anchor_y
    valid = np.zeros((a_pad,), np.float32)
    valid[:a] = 1.0

    fn = _build_contrastive_fn(a_pad, d_pad, tile_m, float(temperature), float(base_temperature))
    return fn(jnp.asarray(x, dtype=jnp.bfloat16),     # single bf16 upload of the features
              jnp.asarray(y), jnp.asarray(valid), jnp.float32(a))


# ----------------------------------------------------------------------------
# Glue: nearest interpolation, flattening, hard-anchor sampling (data-dependent,
# variable-size gather done on host with numpy — not a tensor hot path).
# ----------------------------------------------------------------------------
def nearest_resize(x, out_size, ndim):
    in_size = x.shape[-ndim:]
    if tuple(in_size) == tuple(out_size):
        return x
    idxs = [(jnp.arange(o) * i // o).astype(jnp.int32) for i, o in zip(in_size, out_size)]
    if ndim == 2:
        return x[:, :, idxs[0][:, None], idxs[1][None, :]]
    return x[:, :, idxs[0][:, None, None], idxs[1][None, :, None], idxs[2][None, None, :]]


class PixelContrastLossPallas:
    def __init__(self, temperature=0.07, base_temperature=0.07, ignore_index=-1,
                 max_samples=1024, max_views=1, ndim=2, seed=0):
        self.temperature = temperature
        self.base_temperature = base_temperature
        self.ignore_index = ignore_index
        self.max_samples = max_samples
        self.max_views = max_views
        self.ndim = ndim
        self._rng = np.random.default_rng(seed)  # deterministic replacement for torch.randperm

    def _hard_anchor_sampling(self, X, y_hat, y):
        # TODO(synk): data-dependent, variable-size selection — kept on host (numpy), as in torch.
        batch_size, feat_dim = X.shape[0], X.shape[-1]
        classes = []
        total_classes = 0
        for ii in range(batch_size):
            this_y = y_hat[ii]
            this_classes = [int(c) for c in np.unique(this_y)]
            this_classes = [c for c in this_classes if c != self.ignore_index]
            this_classes = [c for c in this_classes if (this_y == c).sum() > self.max_views]
            classes.append(this_classes)
            total_classes += len(this_classes)
        if total_classes == 0:
            return None, None, 0
        n_view = self.max_samples // total_classes
        n_view = min(n_view, self.max_views)
        X_ = np.zeros((total_classes, n_view, feat_dim), dtype=np.float32)
        y_ = np.zeros((total_classes,), dtype=np.float32)
        ptr = 0
        for ii in range(batch_size):
            this_y_hat = y_hat[ii]
            this_y = y[ii]
            for cls_id in classes[ii]:
                hard = np.nonzero((this_y_hat == cls_id) & (this_y != cls_id))[0]
                easy = np.nonzero((this_y_hat == cls_id) & (this_y == cls_id))[0]
                num_hard, num_easy = len(hard), len(easy)
                if num_hard >= n_view / 2 and num_easy >= n_view / 2:
                    num_hard_keep = n_view // 2
                    num_easy_keep = n_view - num_hard_keep
                elif num_hard >= n_view / 2:
                    num_easy_keep = num_easy
                    num_hard_keep = n_view - num_easy_keep
                elif num_easy >= n_view / 2:
                    num_hard_keep = num_hard
                    num_easy_keep = n_view - num_hard_keep
                else:
                    raise Exception(
                        "this shoud be never touched! {} {} {}".format(num_hard, num_easy, n_view))
                hard = hard[self._rng.permutation(num_hard)[:num_hard_keep]]
                easy = easy[self._rng.permutation(num_easy)[:num_easy_keep]]
                idx = np.concatenate([hard, easy], axis=0)
                X_[ptr, :, :] = X[ii, idx, :]
                y_[ptr] = cls_id
                ptr += 1
        return X_, y_, n_view

    def forward(self, feats, labels, predict, queue=None):
        labels = labels.astype(jnp.float32)
        labels = nearest_resize(labels, feats.shape[-self.ndim:], self.ndim)
        if labels.shape[1] != 1:
            off_shape = (1, 2) + (1,) * self.ndim
            offsets = jnp.arange(1, 3, dtype=jnp.float32).reshape(off_shape)
            labels = jnp.max(labels * offsets, axis=1)
        else:
            labels = labels[:, 0]
        labels = labels.astype(jnp.int32)
        assert labels.shape[-1] == feats.shape[-1], "Labels and features do not match in shape"

        batch_size = feats.shape[0]
        labels = labels.reshape(batch_size, -1)
        predict = predict.reshape(batch_size, -1)
        if feats.ndim == 4:
            feats = jnp.transpose(feats, (0, 2, 3, 1))
        else:
            feats = jnp.transpose(feats, (0, 2, 3, 4, 1))
        feats = feats.reshape(batch_size, -1, feats.shape[-1])

        # TODO(synk): host round trip for anchor sampling (as in the torch reference); only the
        # sampled anchors go back to device (single bf16 upload) — full device-side sampling
        # would need a different (masked/scatter) algorithm.
        X_np = np.asarray(jax.device_get(feats))
        yhat_np = np.asarray(jax.device_get(labels))
        y_np = np.asarray(jax.device_get(predict))
        feats_, labels_, n_view = self._hard_anchor_sampling(X_np, yhat_np, y_np)
        if feats_ is None:
            return jnp.float32(0.0)

        # TODO(synk): queue (negative-sample memory bank) path not wired into the kernel; the
        # analytic diagonal removal assumes anchor set == contrast set.
        anchor_feature = np.concatenate([feats_[:, v, :] for v in range(n_view)], axis=0)
        y_full = np.tile(labels_, n_view)
        return contrastive_loss_pallas(anchor_feature, y_full,
                                       self.temperature, self.base_temperature)


class LossEncapsulationPallas:
    """Port of biapy `loss_encapsulation`: unwrap dict predictions ("pred") and delegate."""

    def __init__(self, loss):
        self.loss = loss

    def forward(self, inputs, targets):
        if isinstance(inputs, dict):
            inputs = inputs["pred"]
        return self.loss(inputs, targets)

    __call__ = forward


if __name__ == "__main__":
    key = jax.random.PRNGKey(0)
    kf, kl, kp = jax.random.split(key, 3)

    B, C, H, W = 2, 32, 16, 16
    feats = jax.random.normal(kf, (B, C, H, W), dtype=jnp.float32)        # NCHW
    # L2-normalize over channels (projection-head output, as this loss is used in practice)
    feats = feats / (jnp.linalg.norm(feats, axis=1, keepdims=True) + 1e-8)
    labels = jax.random.bernoulli(kl, 0.5, (B, 1, H, W)).astype(jnp.int32)  # 2 classes {0, 1}
    flip = jax.random.bernoulli(kp, 0.1, (B, H, W))
    predict = jnp.where(flip, 1 - labels[:, 0], labels[:, 0]).astype(jnp.int32)

    pixel_loss = PixelContrastLossPallas()
    loss_fn = LossEncapsulationPallas(
        lambda pred, tgt: pixel_loss.forward(pred, tgt["labels"], tgt["predict"]))
    loss = loss_fn.forward({"pred": feats}, {"labels": labels, "predict": predict})
    loss = jax.block_until_ready(loss)
    assert bool(jnp.isfinite(loss)), "loss is not finite"
    print("KERNEL_OK")
</pallas_src>

<mosaic_0001>
module attributes {stable_mosaic.version = 11 : i64} {
  func.func @kernel(%arg0: i32, %arg1: memref<128x32xbf16, #tpu.memory_space<vmem>>, %arg2: memref<32x128xbf16, #tpu.memory_space<vmem>>, %arg3: memref<128x1xf32, #tpu.memory_space<vmem>>, %arg4: memref<128x1xf32, #tpu.memory_space<vmem>>, %arg5: memref<1x128xf32, #tpu.memory_space<vmem>>, %arg6: memref<1x128xf32, #tpu.memory_space<vmem>>, %arg7: memref<1x128xf32, #tpu.memory_space<vmem>>, %arg8: memref<1x128xf32, #tpu.memory_space<vmem>>) attributes {dimension_semantics = [#tpu.dimension_semantics<parallel>], iteration_bounds = array<i64: 1>, scalar_prefetch = 0 : i64, scratch_operands = 0 : i64, tpu.core_type = #tpu.core_type<tc>, window_params = [{pipeline_mode = #tpu.pipeline_mode<synchronous>, transform_indices = @transform_0, window_bounds = array<i64: 128, 32>}, {transform_indices = @transform_1, window_bounds = array<i64: 32, 128>}, {pipeline_mode = #tpu.pipeline_mode<synchronous>, transform_indices = @transform_2, window_bounds = array<i64: 128, 1>}, {pipeline_mode = #tpu.pipeline_mode<synchronous>, transform_indices = @transform_3, window_bounds = array<i64: 128, 1>}, {transform_indices = @transform_4, window_bounds = array<i64: 1, 128>}, {transform_indices = @transform_5, window_bounds = array<i64: 1, 128>}, {transform_indices = @transform_6, window_bounds = array<i64: 1, 128>}, {transform_indices = @transform_7, window_bounds = array<i64: 1, 128>}]} {
    %c0 = arith.constant 0 : index
    %c0_0 = arith.constant 0 : index
    %0 = vector.load %arg1[%c0, %c0_0] : memref<128x32xbf16, #tpu.memory_space<vmem>>, vector<128x32xbf16>
    %c0_1 = arith.constant 0 : index
    %c0_2 = arith.constant 0 : index
    %1 = vector.load %arg2[%c0_1, %c0_2] : memref<32x128xbf16, #tpu.memory_space<vmem>>, vector<32x128xbf16>
    %cst = arith.constant dense<0.000000e+00> : vector<128x128xf32>
    %2 = tpu.matmul %0, %1, %cst {dimension_numbers = #tpu.dot_dimension_numbers<[1], [0], [0], [1], [0, 0, 1, 1], [], []>} : vector<128x32xbf16>, vector<32x128xbf16>, vector<128x128xf32> -> vector<128x128xf32>
    %cst_3 = arith.constant 14.2857141 : f32
    %3 = vector.broadcast %cst_3 : f32 to vector<128x128xf32>
    %4 = arith.mulf %2, %3 : vector<128x128xf32>
    %c0_4 = arith.constant 0 : index
    %c0_5 = arith.constant 0 : index
    %5 = vector.load %arg4[%c0_4, %c0_5] : memref<128x1xf32, #tpu.memory_space<vmem>>, vector<128x1xf32>
    %6 = vector.broadcast %5 : vector<128x1xf32> to vector<128x128xf32>
    %7 = arith.addf %4, %6 : vector<128x128xf32>
    %c0_6 = arith.constant 0 : index
    %c0_7 = arith.constant 0 : index
    %8 = vector.load %arg6[%c0_6, %c0_7] : memref<1x128xf32, #tpu.memory_space<vmem>>, vector<1x128xf32>
    %cst_8 = arith.constant dense<0xFF800000> : vector<128xf32>
    %9 = vector.multi_reduction <maximumf>, %7, %cst_8 [0] : vector<128x128xf32> to vector<128xf32>
    %10 = vector.shape_cast %9 : vector<128xf32> to vector<1x128xf32>
    %cst_9 = arith.constant 5.000000e-01 : f32
    %11 = vector.broadcast %cst_9 : f32 to vector<1x128xf32>
    %12 = arith.cmpf ogt, %8, %11 : vector<1x128xf32>
    %cst_10 = arith.constant 0.000000e+00 : f32
    %13 = vector.broadcast %cst_10 : f32 to vector<1x128xf32>
    %14 = arith.select %12, %10, %13 : vector<1x128xi1>, vector<1x128xf32>
    %15 = vector.broadcast %14 : vector<1x128xf32> to vector<128x128xf32>
    %16 = arith.subf %7, %15 : vector<128x128xf32>
    %17 = math.exp %16 : vector<128x128xf32>
    %c0_11 = arith.constant 0 : index
    %c0_12 = arith.constant 0 : index
    %18 = vector.load %arg3[%c0_11, %c0_12] : memref<128x1xf32, #tpu.memory_space<vmem>>, vector<128x1xf32>
    %c0_13 = arith.constant 0 : index
    %c0_14 = arith.constant 0 : index
    %19 = vector.load %arg5[%c0_13, %c0_14] : memref<1x128xf32, #tpu.memory_space<vmem>>, vector<1x128xf32>
    %20 = vector.broadcast %18 : vector<128x1xf32> to vector<128x128xf32>
    %21 = vector.broadcast %19 : vector<1x128xf32> to vector<128x128xf32>
    %22 = arith.cmpf oeq, %20, %21 : vector<128x128xf32>
    %23 = arith.extui %22 : vector<128x128xi1> to vector<128x128xi32>
    %24 = arith.sitofp %23 : vector<128x128xi32> to vector<128x128xf32>
    %cst_15 = arith.constant dense<0.000000e+00> : vector<128xf32>
    %25 = vector.multi_reduction <add>, %17, %cst_15 [0] : vector<128x128xf32> to vector<128xf32>
    %26 = vector.shape_cast %25 : vector<128xf32> to vector<1x128xf32>
    %27 = arith.mulf %17, %24 : vector<128x128xf32>
    %cst_16 = arith.constant dense<0.000000e+00> : vector<128xf32>
    %28 = vector.multi_reduction <add>, %27, %cst_16 [0] : vector<128x128xf32> to vector<128xf32>
    %29 = vector.shape_cast %28 : vector<128xf32> to vector<1x128xf32>
    %30 = arith.subf %26, %29 : vector<1x128xf32>
    %31 = vector.broadcast %30 : vector<1x128xf32> to vector<128x128xf32>
    %32 = arith.addf %17, %31 : vector<128x128xf32>
    %cst_17 = arith.constant 1.000000e-30 : f32
    %33 = vector.broadcast %cst_17 : f32 to vector<128x128xf32>
    %34 = arith.maximumf %32, %33 : vector<128x128xf32>
    %35 = math.log %34 : vector<128x128xf32>
    %36 = arith.subf %16, %35 : vector<128x128xf32>
    %c0_18 = arith.constant 0 : index
    %c0_19 = arith.constant 0 : index
    %37 = vector.load %arg7[%c0_18, %c0_19] : memref<1x128xf32, #tpu.memory_space<vmem>>, vector<1x128xf32>
    %38 = arith.subf %37, %14 : vector<1x128xf32>
    %39 = math.exp %38 : vector<1x128xf32>
    %40 = arith.addf %39, %30 : vector<1x128xf32>
    %cst_20 = arith.constant 1.000000e-30 : f32
    %41 = vector.broadcast %cst_20 : f32 to vector<1x128xf32>
    %42 = arith.maximumf %40, %41 : vector<1x128xf32>
    %43 = math.log %42 : vector<1x128xf32>
    %44 = arith.subf %38, %43 : vector<1x128xf32>
    %cst_21 = arith.constant dense<0.000000e+00> : vector<128xf32>
    %45 = vector.multi_reduction <add>, %24, %cst_21 [0] : vector<128x128xf32> to vector<128xf32>
    %46 = vector.shape_cast %45 : vector<128xf32> to vector<1x128xf32>
    %47 = arith.subf %46, %8 : vector<1x128xf32>
    %48 = arith.mulf %24, %36 : vector<128x128xf32>
    %cst_22 = arith.constant dense<0.000000e+00> : vector<128xf32>
    %49 = vector.multi_reduction <add>, %48, %cst_22 [0] : vector<128x128xf32> to vector<128xf32>
    %50 = vector.shape_cast %49 : vector<128xf32> to vector<1x128xf32>
    %51 = arith.mulf %8, %44 : vector<1x128xf32>
    %52 = arith.subf %50, %51 : vector<1x128xf32>
    %cst_23 = arith.constant 5.000000e-01 : f32
    %53 = vector.broadcast %cst_23 : f32 to vector<1x128xf32>
    %54 = arith.cmpf ogt, %47, %53 : vector<1x128xf32>
    %cst_24 = arith.constant 1.000000e+00 : f32
    %55 = vector.broadcast %cst_24 : f32 to vector<1x128xf32>
    %56 = arith.select %54, %47, %55 : vector<1x128xi1>, vector<1x128xf32>
    %57 = arith.divf %52, %56 : vector<1x128xf32>
    %cst_25 = arith.constant 0.000000e+00 : f32
    %58 = vector.broadcast %cst_25 : f32 to vector<1x128xf32>
    %59 = arith.select %54, %57, %58 : vector<1x128xi1>, vector<1x128xf32>
    %cst_26 = arith.constant -1.000000e+00 : f32
    %60 = vector.broadcast %cst_26 : f32 to vector<1x128xf32>
    %61 = arith.mulf %60, %59 : vector<1x128xf32>
    %62 = arith.mulf %61, %8 : vector<1x128xf32>
    %c0_27 = arith.constant 0 : index
    %c0_28 = arith.constant 0 : index
    %63 = vector.load %arg8[%c0_27, %c0_28] : memref<1x128xf32, #tpu.memory_space<vmem>>, vector<1x128xf32>
    tpu.vector_store %arg8[%c0_27, %c0_28], %62 {strides = array<i32>} : memref<1x128xf32, #tpu.memory_space<vmem>>, vector<1x128xf32>,
    return
  }
  func.func @transform_0(%arg0: i32) -> (i32, i32) {
    %c0_i32 = arith.constant 0 : i32
    %c0_i32_0 = arith.constant 0 : i32
    %c0_i32_1 = arith.constant 0 : i32
    return %c0_i32, %c0_i32_0 : i32, i32
  }
  func.func @transform_1(%arg0: i32) -> (i32, i32) {
    %c0_i32 = arith.constant 0 : i32
    %c0_i32_0 = arith.constant 0 : i32
    return %c0_i32, %arg0 : i32, i32
  }
  func.func @transform_2(%arg0: i32) -> (i32, i32) {
    %c0_i32 = arith.constant 0 : i32
    %c0_i32_0 = arith.constant 0 : i32
    %c0_i32_1 = arith.constant 0 : i32
    return %c0_i32, %c0_i32_0 : i32, i32
  }
  func.func @transform_3(%arg0: i32) -> (i32, i32) {
    %c0_i32 = arith.constant 0 : i32
    %c0_i32_0 = arith.constant 0 : i32
    %c0_i32_1 = arith.constant 0 : i32
    return %c0_i32, %c0_i32_0 : i32, i32
  }
  func.func @transform_4(%arg0: i32) -> (i32, i32) {
    %c0_i32 = arith.constant 0 : i32
    %c0_i32_0 = arith.constant 0 : i32
    return %c0_i32, %arg0 : i32, i32
  }
  func.func @transform_5(%arg0: i32) -> (i32, i32) {
    %c0_i32 = arith.constant 0 : i32
    %c0_i32_0 = arith.constant 0 : i32
    return %c0_i32, %arg0 : i32, i32
  }
  func.func @transform_6(%arg0: i32) -> (i32, i32) {
    %c0_i32 = arith.constant 0 : i32
    %c0_i32_0 = arith.constant 0 : i32
    return %c0_i32, %arg0 : i32, i32
  }
  func.func @transform_7(%arg0: i32) -> (i32, i32) {
    %c0_i32 = arith.constant 0 : i32
    %c0_i32_0 = arith.constant 0 : i32
    return %c0_i32, %arg0 : i32, i32
  }
}

</mosaic_0001>

<llo_original>
// kernel: fn.1
$region0: #{fn.1}
  #allocation0 [shape = 'u32[]', space=smem, size = 0x4, offset = 0x4, fixed_abs, tag = 'smem constant byte address 0x4 - core index']
  #allocation1 [shape = 'u32[144,128]{1,0:T(1,128)}', space=vmem, size = 0x12000, scoped, tag = 'internal scratch']
  %s0 = inlined_call_operand.vmem [shape: bf16[128,32], index: 0, kind: input, shape index: {}]
  %s1 = inlined_call_operand.vmem [shape: bf16[32,128], index: 1, kind: input, shape index: {}]
  %s2 = inlined_call_operand.vmem [shape: f32[128,1], index: 2, kind: input, shape index: {}]
  %s3 = inlined_call_operand.vmem [shape: f32[128,1], index: 3, kind: input, shape index: {}]
  %s4 = inlined_call_operand.vmem [shape: f32[1,128], index: 4, kind: input, shape index: {}]
  %s5 = inlined_call_operand.vmem [shape: f32[1,128], index: 5, kind: input, shape index: {}]
  %s6 = inlined_call_operand.vmem [shape: f32[1,128], index: 6, kind: input, shape index: {}]
  %s7 = inlined_call_operand.vmem [shape: f32[1,128], index: 7, kind: output, shape index: {}]
  %s8 = sld [smem:[#allocation0]]
  $region38: #{fn.1} parent=0
    _
  %s10 = ssub.s32 1, %s8
  %s11 = scalar_select 0, %s10, %s8
  // Predicated region
  $region2: #{fn.1} parent=0 // pred_check
    _
  $region3: #{fn.1} parent=0 // pred_check_branch
    %13 = sbr.rel (0) target = $region5
  $region4: #{fn.1} parent=0 // pred_region
    _
  $region5: #{fn.1} parent=0 // pred_fallthru
    _
  // Predicated region
  $region6: #{fn.1} parent=0 // pred_check
    _
  $region7: #{fn.1} parent=0 // pred_check_branch
    %15 = sbr.rel (0) target = $region9
  $region8: #{fn.1} parent=0 // pred_region
    _
  $region9: #{fn.1} parent=0 // pred_fallthru
    _
  // Predicated region
  $region10: #{fn.1} parent=0 // pred_check
    _
  $region11: #{fn.1} parent=0 // pred_check_branch
    %17 = sbr.rel (0) target = $region13
  $region12: #{fn.1} parent=0 // pred_region
    _
  $region13: #{fn.1} parent=0 // pred_fallthru
    _
  // Predicated region
  $region14: #{fn.1} parent=0 // pred_check
    _
  $region15: #{fn.1} parent=0 // pred_check_branch
    %19 = sbr.rel (0) target = $region17
  $region16: #{fn.1} parent=0 // pred_region
    _
  $region17: #{fn.1} parent=0 // pred_fallthru
    _
  // Predicated region
  $region18: #{fn.1} parent=0 // pred_check
    _
  $region19: #{fn.1} parent=0 // pred_check_branch
    %21 = sbr.rel (0) target = $region21
  $region20: #{fn.1} parent=0 // pred_region
    _
  $region21: #{fn.1} parent=0 // pred_fallthru
    _
  // Predicated region
  $region22: #{fn.1} parent=0 // pred_check
    _
  $region23: #{fn.1} parent=0 // pred_check_branch
    %23 = sbr.rel (0) target = $region25
  $region24: #{fn.1} parent=0 // pred_region
    _
  $region25: #{fn.1} parent=0 // pred_fallthru
    _
  // Predicated region
  $region26: #{fn.1} parent=0 // pred_check
    _
  $region27: #{fn.1} parent=0 // pred_check_branch
    %25 = sbr.rel (0) target = $region29
  $region28: #{fn.1} parent=0 // pred_region
    _
  $region29: #{fn.1} parent=0 // pred_fallthru
    _
  %v27 = vld [vmem:[%s0] sm:$0xf]
  %v28 = vld [vmem:[%s0 + $0x4] sm:$0xf]
  %v29 = vld [vmem:[%s0 + $0x8] sm:$0xf]
  %v30 = vld [vmem:[%s0 + $0xc] sm:$0xf]
  %v31 = vld [vmem:[%s0 + $0x10] sm:$0xf]
  %v32 = vld [vmem:[%s0 + $0x14] sm:$0xf]
  %v33 = vld [vmem:[%s0 + $0x18] sm:$0xf]
  %v34 = vld [vmem:[%s0 + $0x1c] sm:$0xf]
  %v35 = vld [vmem:[%s0 + $0x20] sm:$0xf]
  %v36 = vld [vmem:[%s0 + $0x24] sm:$0xf]
  %v37 = vld [vmem:[%s0 + $0x28] sm:$0xf]
  %v38 = vld [vmem:[%s0 + $0x2c] sm:$0xf]
  %v39 = vld [vmem:[%s0 + $0x30] sm:$0xf]
  %v40 = vld [vmem:[%s0 + $0x34] sm:$0xf]
  %v41 = vld [vmem:[%s0 + $0x38] sm:$0xf]
  %v42 = vld [vmem:[%s0 + $0x3c] sm:$0xf]
  %v43 = vld [vmem:[%s1] sm:$0xf]
  %v44 = vld [vmem:[%s1 + $0x4] sm:$0xf]
  %v45 = vld [vmem:[%s1 + $0x8] sm:$0xf]
  %v46 = vld [vmem:[%s1 + $0xc] sm:$0xf]
  %v63 = vunpack.c.l.b16 %v27
  %v64 = vunpack.c.l.b16 %v28
  %v65 = vunpack.c.l.b16 %v29
  %v66 = vunpack.c.l.b16 %v30
  %v67 = vunpack.c.l.b16 %v31
  %v68 = vunpack.c.l.b16 %v32
  %v69 = vunpack.c.l.b16 %v33
  %v70 = vunpack.c.l.b16 %v34
  %v71 = vunpack.c.l.b16 %v35
  %v72 = vunpack.c.l.b16 %v36
  %v73 = vunpack.c.l.b16 %v37
  %v74 = vunpack.c.l.b16 %v38
  %v75 = vunpack.c.l.b16 %v39
  %v76 = vunpack.c.l.b16 %v40
  %v77 = vunpack.c.l.b16 %v41
  %v78 = vunpack.c.l.b16 %v42
  %v79 = vpack.c.b16 %v64, %v63
  %v80 = vpack.c.b16 %v66, %v65
  %v81 = vpack.c.b16 %v68, %v67
  %v82 = vpack.c.b16 %v70, %v69
  %v83 = vpack.c.b16 %v72, %v71
  %v84 = vpack.c.b16 %v74, %v73
  %v85 = vpack.c.b16 %v76, %v75
  %v86 = vpack.c.b16 %v78, %v77
  %v91 = vunpack.c.l.b16 %v43
  %v92 = vunpack.c.l.b16 %v44
  %v93 = vunpack.c.l.b16 %v45
  %v94 = vunpack.c.l.b16 %v46
  %v95 = vpack.c.b16 %v92, %v91
  %v96 = vpack.c.b16 %v94, %v93
  %vm99 = vcmask 261120
  %v101 = vsel %vm99, %v79, 0
  %v104 = vsel %vm99, %v80, 0
  %v107 = vsel %vm99, %v81, 0
  %v110 = vsel %vm99, %v82, 0
  %v113 = vsel %vm99, %v83, 0
  %v116 = vsel %vm99, %v84, 0
  %v119 = vsel %vm99, %v85, 0
  %v122 = vsel %vm99, %v86, 0
  %124 = vmatprep.subr.bf16.mxu0 0
  %125 = vmatpush1.bf16.msra.mxu0 %v95
  %126 = vmatprep.subr.bf16.mxu0 0
  %127 = vmatpush1.bf16.msra.mxu0 %v96
  %128 = vmatprep.subr.bf16.mxu0 0
  %129 = vmatpush1.bf16.msra.mxu0 0
  %130 = vmatprep.subr.bf16.mxu0 0
  %131 = vmatpush1.bf16.msra.mxu0 0
  %132 = vmatprep.subr.bf16.mxu0 0
  %133 = vmatpush1.bf16.msra.mxu0 0
  %134 = vmatprep.subr.bf16.mxu0 0
  %135 = vmatpush1.bf16.msra.mxu0 0
  %136 = vmatprep.subr.bf16.mxu0 0
  %137 = vmatpush1.bf16.msra.mxu0 0
  %138 = vmatprep.subr.bf16.mxu0 0
  %139 = vmatpush1.bf16.msra.mxu0 0
  %140 = vmatprep.subr.bf16.mxu0 0
  %141 = vmatpush1.bf16.msra.mxu0 0
  %142 = vmatprep.subr.bf16.mxu0 0
  %143 = vmatpush1.bf16.msra.mxu0 0
  %144 = vmatprep.subr.bf16.mxu0 0
  %145 = vmatpush1.bf16.msra.mxu0 0
  %146 = vmatprep.subr.bf16.mxu0 0
  %147 = vmatpush1.bf16.msra.mxu0 0
  %148 = vmatprep.subr.bf16.mxu0 0
  %149 = vmatpush1.bf16.msra.mxu0 0
  %150 = vmatprep.subr.bf16.mxu0 0
  %151 = vmatpush1.bf16.msra.mxu0 0
  %152 = vmatprep.subr.bf16.mxu0 0
  %153 = vmatpush1.bf16.msra.mxu0 0
  %154 = vmatprep.subr.bf16.mxu0 0
  %155 = vmatpush1.bf16.msra.mxu0 0
  %156 = vmatprep.mubr.bf16.mxu0 0
  %157 = vmatmul.mubr.bf16.gmra.mrb[0].mxu0 %v101
  %v158 = vpop.f32.mrb[0].mxu0
  %v159 = vadd.f32 0.0, %v158
  %v160 = vpop.f32.mrb[0].mxu0
  %v161 = vpop.f32.mrb[0].mxu0
  %v162 = vadd.f32 0.0, %v161
  %v163 = vpop.f32.mrb[0].mxu0
  %164 = vmatprep.mubr.bf16.mxu0 0
  %165 = vmatmul.mubr.bf16.gmra.mrb[0].mxu0 %v104
  %v166 = vpop.f32.mrb[0].mxu0
  %v167 = vadd.f32 0.0, %v166
  %v168 = vpop.f32.mrb[0].mxu0
  %v169 = vpop.f32.mrb[0].mxu0
  %v170 = vadd.f32 0.0, %v169
  %v171 = vpop.f32.mrb[0].mxu0
  %172 = vmatprep.mubr.bf16.mxu0 0
  %173 = vmatmul.mubr.bf16.gmra.mrb[0].mxu0 %v107
  %v174 = vpop.f32.mrb[0].mxu0
  %v175 = vadd.f32 0.0, %v174
  %v176 = vpop.f32.mrb[0].mxu0
  %v177 = vpop.f32.mrb[0].mxu0
  %v178 = vadd.f32 0.0, %v177
  %v179 = vpop.f32.mrb[0].mxu0
  %180 = vmatprep.mubr.bf16.mxu0 0
  %181 = vmatmul.mubr.bf16.gmra.mrb[0].mxu0 %v110
  %v182 = vpop.f32.mrb[0].mxu0
  %v183 = vadd.f32 0.0, %v182
  %v184 = vpop.f32.mrb[0].mxu0
  %v185 = vpop.f32.mrb[0].mxu0
  %v186 = vadd.f32 0.0, %v185
  %v187 = vpop.f32.mrb[0].mxu0
  %188 = vmatprep.mubr.bf16.mxu0 0
  %189 = vmatmul.mubr.bf16.gmra.mrb[0].mxu0 %v113
  %v190 = vpop.f32.mrb[0].mxu0
  %v191 = vadd.f32 0.0, %v190
  %v192 = vpop.f32.mrb[0].mxu0
  %v193 = vpop.f32.mrb[0].mxu0
  %v194 = vadd.f32 0.0, %v193
  %v195 = vpop.f32.mrb[0].mxu0
  %196 = vmatprep.mubr.bf16.mxu0 0
  %197 = vmatmul.mubr.bf16.gmra.mrb[0].mxu0 %v116
  %v198 = vpop.f32.mrb[0].mxu0
  %v199 = vadd.f32 0.0, %v198
  %v200 = vpop.f32.mrb[0].mxu0
  %v201 = vpop.f32.mrb[0].mxu0
  %v202 = vadd.f32 0.0, %v201
  %v203 = vpop.f32.mrb[0].mxu0
  %204 = vmatprep.mubr.bf16.mxu0 0
  %205 = vmatmul.mubr.bf16.gmra.mrb[0].mxu0 %v119
  %v206 = vpop.f32.mrb[0].mxu0
  %v207 = vadd.f32 0.0, %v206
  %v208 = vpop.f32.mrb[0].mxu0
  %v209 = vpop.f32.mrb[0].mxu0
  %v210 = vadd.f32 0.0, %v209
  %v211 = vpop.f32.mrb[0].mxu0
  %212 = vmatprep.mubr.bf16.mxu0 0
  %213 = vmatmul.mubr.bf16.gmra.mrb[0].mxu0 %v122
  %v214 = vpop.f32.mrb[0].mxu0
  %v215 = vadd.f32 0.0, %v214
  %v216 = vpop.f32.mrb[0].mxu0
  %v217 = vpop.f32.mrb[0].mxu0
  %v218 = vadd.f32 0.0, %v217
  %v219 = vpop.f32.mrb[0].mxu0
  %220 = vdwg.mxu0
  %v221 = vmul.f32 %v159, 14.285714
  %v222 = vmul.f32 %v162, 14.285714
  %v223 = vmul.f32 %v167, 14.285714
  %v224 = vmul.f32 %v170, 14.285714
  %v225 = vmul.f32 %v175, 14.285714
  %v226 = vmul.f32 %v178, 14.285714
  %v227 = vmul.f32 %v183, 14.285714
  %v228 = vmul.f32 %v186, 14.285714
  %v229 = vmul.f32 %v191, 14.285714
  %v230 = vmul.f32 %v194, 14.285714
  %v231 = vmul.f32 %v199, 14.285714
  %v232 = vmul.f32 %v202, 14.285714
  %v233 = vmul.f32 %v207, 14.285714
  %v234 = vmul.f32 %v210, 14.285714
  %v235 = vmul.f32 %v215, 14.285714
  %v236 = vmul.f32 %v218, 14.285714
  %v237 = vld [vmem:[%s3] sm:$0xff]
  %v238 = vld [vmem:[%s3 + $0x8] sm:$0xff]
  %v239 = vld [vmem:[%s3 + $0x10] sm:$0xff]
  %v240 = vld [vmem:[%s3 + $0x18] sm:$0xff]
  %v241 = vld [vmem:[%s3 + $0x20] sm:$0xff]
  %v242 = vld [vmem:[%s3 + $0x28] sm:$0xff]
  %v243 = vld [vmem:[%s3 + $0x30] sm:$0xff]
  %v244 = vld [vmem:[%s3 + $0x38] sm:$0xff]
  %v245 = vld [vmem:[%s3 + $0x40] sm:$0xff]
  %v246 = vld [vmem:[%s3 + $0x48] sm:$0xff]
  %v247 = vld [vmem:[%s3 + $0x50] sm:$0xff]
  %v248 = vld [vmem:[%s3 + $0x58] sm:$0xff]
  %v249 = vld [vmem:[%s3 + $0x60] sm:$0xff]
  %v250 = vld [vmem:[%s3 + $0x68] sm:$0xff]
  %v251 = vld [vmem:[%s3 + $0x70] sm:$0xff]
  %v252 = vld [vmem:[%s3 + $0x78] sm:$0xff]
  %254 = vset.pattern.permute.xlu0 0
  %255 = vperm.xlu0 %254, %v237
  %v256 = vpop.permute.xlu0 %255
  %259 = vset.pattern.permute.xlu0 0
  %260 = vperm.xlu0 %259, %v238
  %v261 = vpop.permute.xlu0 %260
  %264 = vset.pattern.permute.xlu0 0
  %265 = vperm.xlu0 %264, %v239
  %v266 = vpop.permute.xlu0 %265
  %269 = vset.pattern.permute.xlu0 0
  %270 = vperm.xlu0 %269, %v240
  %v271 = vpop.permute.xlu0 %270
  %274 = vset.pattern.permute.xlu0 0
  %275 = vperm.xlu0 %274, %v241
  %v276 = vpop.permute.xlu0 %275
  %279 = vset.pattern.permute.xlu0 0
  %280 = vperm.xlu0 %279, %v242
  %v281 = vpop.permute.xlu0 %280
  %284 = vset.pattern.permute.xlu0 0
  %285 = vperm.xlu0 %284, %v243
  %v286 = vpop.permute.xlu0 %285
  %289 = vset.pattern.permute.xlu0 0
  %290 = vperm.xlu0 %289, %v244
  %v291 = vpop.permute.xlu0 %290
  %294 = vset.pattern.permute.xlu0 0
  %295 = vperm.xlu0 %294, %v245
  %v296 = vpop.permute.xlu0 %295
  %299 = vset.pattern.permute.xlu0 0
  %300 = vperm.xlu0 %299, %v246
  %v301 = vpop.permute.xlu0 %300
  %304 = vset.pattern.permute.xlu0 0
  %305 = vperm.xlu0 %304, %v247
  %v306 = vpop.permute.xlu0 %305
  %309 = vset.pattern.permute.xlu0 0
  %310 = vperm.xlu0 %309, %v248
  %v311 = vpop.permute.xlu0 %310
  %314 = vset.pattern.permute.xlu0 0
  %315 = vperm.xlu0 %314, %v249
  %v316 = vpop.permute.xlu0 %315
  %319 = vset.pattern.permute.xlu0 0
  %320 = vperm.xlu0 %319, %v250
  %v321 = vpop.permute.xlu0 %320
  %324 = vset.pattern.permute.xlu0 0
  %325 = vperm.xlu0 %324, %v251
  %v326 = vpop.permute.xlu0 %325
  %329 = vset.pattern.permute.xlu0 0
  %330 = vperm.xlu0 %329, %v252
  %v331 = vpop.permute.xlu0 %330
  %v333 = vadd.f32 %v221, %v256
  %v334 = vadd.f32 %v222, %v261
  %v335 = vadd.f32 %v223, %v266
  %v336 = vadd.f32 %v224, %v271
  %v337 = vadd.f32 %v225, %v276
  %v338 = vadd.f32 %v226, %v281
  %v339 = vadd.f32 %v227, %v286
  %v340 = vadd.f32 %v228, %v291
  %v341 = vadd.f32 %v229, %v296
  %v342 = vadd.f32 %v230, %v301
  %v343 = vadd.f32 %v231, %v306
  %v344 = vadd.f32 %v232, %v311
  %v345 = vadd.f32 %v233, %v316
  %v346 = vadd.f32 %v234, %v321
  %v347 = vadd.f32 %v235, %v326
  %v348 = vadd.f32 %v236, %v331
  %v349 = vld [vmem:[%s5] sm:$0x1]
  %v350 = vmax.f32 %v333, %v337
  %v351 = vmax.f32 %v334, %v338
  %v352 = vmax.f32 %v335, %v339
  %v353 = vmax.f32 %v336, %v340
  %v354 = vmax.f32 %v350, %v341
  %v355 = vmax.f32 %v351, %v342
  %v356 = vmax.f32 %v352, %v343
  %v357 = vmax.f32 %v353, %v344
  %v358 = vmax.f32 %v354, %v345
  %v359 = vmax.f32 %v355, %v346
  %v360 = vmax.f32 %v356, %v347
  %v361 = vmax.f32 %v357, %v348
  %v362 = vmax.f32 %v358, %v359
  %v363 = vmax.f32 %v360, %v361
  %v364 = vmax.f32 %v362, %v363
  %v365 = vrot.slane %v364, 4
  %v366 = vmax.f32 %v364, %v365
  %v367 = vrot.slane %v366, 2
  %v368 = vmax.f32 %v366, %v367
  %v369 = vrot.slane %v368, 1
  %v370 = vmax.f32 %v368, %v369
  %vm371 = vcmp.gt.f32.partialorder %v349, 0.5
  %v372 = vsel %vm371, %v370, 0.0
  %v374 = vlaneseq
  %v375 = vshrl.u32 %v374, 7
  %v376 = vsub.s32 0, %v375
  %v377 = vrot.slane %v372, %v376
  %v379 = vsub.f32 %v333, %v377
  %v380 = vsub.f32 %v334, %v377
  %v381 = vsub.f32 %v335, %v377
  %v382 = vsub.f32 %v336, %v377
  %v383 = vsub.f32 %v337, %v377
  %v384 = vsub.f32 %v338, %v377
  %v385 = vsub.f32 %v339, %v377
  %v386 = vsub.f32 %v340, %v377
  %v387 = vsub.f32 %v341, %v377
  %v388 = vsub.f32 %v342, %v377
  %v389 = vsub.f32 %v343, %v377
  %v390 = vsub.f32 %v344, %v377
  %v391 = vsub.f32 %v345, %v377
  %v392 = vsub.f32 %v346, %v377
  %v393 = vsub.f32 %v347, %v377
  %v394 = vsub.f32 %v348, %v377
  %v395 = vmul.f32 %v379, 1.442695
  %v396 = vpow.pop %v395
  %v397 = vmul.f32 %v380, 1.442695
  %v398 = vpow.pop %v397
  %v399 = vmul.f32 %v381, 1.442695
  %v400 = vpow.pop %v399
  %v401 = vmul.f32 %v382, 1.442695
  %v402 = vpow.pop %v401
  %v403 = vmul.f32 %v383, 1.442695
  %v404 = vpow.pop %v403
  %v405 = vmul.f32 %v384, 1.442695
  %v406 = vpow.pop %v405
  %v407 = vmul.f32 %v385, 1.442695
  %v408 = vpow.pop %v407
  %v409 = vmul.f32 %v386, 1.442695
  %v410 = vpow.pop %v409
  %v411 = vmul.f32 %v387, 1.442695
  %v412 = vpow.pop %v411
  %v413 = vmul.f32 %v388, 1.442695
  %v414 = vpow.pop %v413
  %v415 = vmul.f32 %v389, 1.442695
  %v416 = vpow.pop %v415
  %v417 = vmul.f32 %v390, 1.442695
  %v418 = vpow.pop %v417
  %v419 = vmul.f32 %v391, 1.442695
  %v420 = vpow.pop %v419
  %v421 = vmul.f32 %v392, 1.442695
  %v422 = vpow.pop %v421
  %v423 = vmul.f32 %v393, 1.442695
  %v424 = vpow.pop %v423
  %v425 = vmul.f32 %v394, 1.442695
  %v426 = vpow.pop %v425
  %v427 = vld [vmem:[%s2] sm:$0xff]
  %v428 = vld [vmem:[%s2 + $0x8] sm:$0xff]
  %v429 = vld [vmem:[%s2 + $0x10] sm:$0xff]
  %v430 = vld [vmem:[%s2 + $0x18] sm:$0xff]
  %v431 = vld [vmem:[%s2 + $0x20] sm:$0xff]
  %v432 = vld [vmem:[%s2 + $0x28] sm:$0xff]
  %v433 = vld [vmem:[%s2 + $0x30] sm:$0xff]
  %v434 = vld [vmem:[%s2 + $0x38] sm:$0xff]
  %v435 = vld [vmem:[%s2 + $0x40] sm:$0xff]
  %v436 = vld [vmem:[%s2 + $0x48] sm:$0xff]
  %v437 = vld [vmem:[%s2 + $0x50] sm:$0xff]
  %v438 = vld [vmem:[%s2 + $0x58] sm:$0xff]
  %v439 = vld [vmem:[%s2 + $0x60] sm:$0xff]
  %v440 = vld [vmem:[%s2 + $0x68] sm:$0xff]
  %v441 = vld [vmem:[%s2 + $0x70] sm:$0xff]
  %v442 = vld [vmem:[%s2 + $0x78] sm:$0xff]
  %v443 = vld [vmem:[%s4] sm:$0x1]
  %445 = vset.pattern.permute.xlu0 0
  %446 = vperm.xlu0 %445, %v427
  %v447 = vpop.permute.xlu0 %446
  %450 = vset.pattern.permute.xlu0 0
  %451 = vperm.xlu0 %450, %v428
  %v452 = vpop.permute.xlu0 %451
  %455 = vset.pattern.permute.xlu0 0
  %456 = vperm.xlu0 %455, %v429
  %v457 = vpop.permute.xlu0 %456
  %460 = vset.pattern.permute.xlu0 0
  %461 = vperm.xlu0 %460, %v430
  %v462 = vpop.permute.xlu0 %461
  %465 = vset.pattern.permute.xlu0 0
  %466 = vperm.xlu0 %465, %v431
  %v467 = vpop.permute.xlu0 %466
  %470 = vset.pattern.permute.xlu0 0
  %471 = vperm.xlu0 %470, %v432
  %v472 = vpop.permute.xlu0 %471
  %475 = vset.pattern.permute.xlu0 0
  %476 = vperm.xlu0 %475, %v433
  %v477 = vpop.permute.xlu0 %476
  %480 = vset.pattern.permute.xlu0 0
  %481 = vperm.xlu0 %480, %v434
  %v482 = vpop.permute.xlu0 %481
  %485 = vset.pattern.permute.xlu0 0
  %486 = vperm.xlu0 %485, %v435
  %v487 = vpop.permute.xlu0 %486
  %490 = vset.pattern.permute.xlu0 0
  %491 = vperm.xlu0 %490, %v436
  %v492 = vpop.permute.xlu0 %491
  %495 = vset.pattern.permute.xlu0 0
  %496 = vperm.xlu0 %495, %v437
  %v497 = vpop.permute.xlu0 %496
  %500 = vset.pattern.permute.xlu0 0
  %501 = vperm.xlu0 %500, %v438
  %v502 = vpop.permute.xlu0 %501
  %505 = vset.pattern.permute.xlu0 0
  %506 = vperm.xlu0 %505, %v439
  %v507 = vpop.permute.xlu0 %506
  %510 = vset.pattern.permute.xlu0 0
  %511 = vperm.xlu0 %510, %v440
  %v512 = vpop.permute.xlu0 %511
  %515 = vset.pattern.permute.xlu0 0
  %516 = vperm.xlu0 %515, %v441
  %v517 = vpop.permute.xlu0 %516
  %520 = vset.pattern.permute.xlu0 0
  %521 = vperm.xlu0 %520, %v442
  %v522 = vpop.permute.xlu0 %521
  %v525 = vlaneseq
  %v526 = vshrl.u32 %v525, 7
  %v527 = vsub.s32 0, %v526
  %v528 = vrot.slane %v443, %v527
  %vm530 = vcmp.eq.f32.partialorder %v447, %v528
  %vm531 = vcmp.eq.f32.partialorder %v452, %v528
  %vm532 = vcmp.eq.f32.partialorder %v457, %v528
  %vm533 = vcmp.eq.f32.partialorder %v462, %v528
  %vm534 = vcmp.eq.f32.partialorder %v467, %v528
  %vm535 = vcmp.eq.f32.partialorder %v472, %v528
  %vm536 = vcmp.eq.f32.partialorder %v477, %v528
  %vm537 = vcmp.eq.f32.partialorder %v482, %v528
  %vm538 = vcmp.eq.f32.partialorder %v487, %v528
  %vm539 = vcmp.eq.f32.partialorder %v492, %v528
  %vm540 = vcmp.eq.f32.partialorder %v497, %v528
  %vm541 = vcmp.eq.f32.partialorder %v502, %v528
  %vm542 = vcmp.eq.f32.partialorder %v507, %v528
  %vm543 = vcmp.eq.f32.partialorder %v512, %v528
  %vm544 = vcmp.eq.f32.partialorder %v517, %v528
  %vm545 = vcmp.eq.f32.partialorder %v522, %v528
  %v546 = vsel %vm530, 1, 0
  %v547 = vsel %vm531, 1, 0
  %v548 = vsel %vm532, 1, 0
  %v549 = vsel %vm533, 1, 0
  %v550 = vsel %vm534, 1, 0
  %v551 = vsel %vm535, 1, 0
  %v552 = vsel %vm536, 1, 0
  %v553 = vsel %vm537, 1, 0
  %v554 = vsel %vm538, 1, 0
  %v555 = vsel %vm539, 1, 0
  %v556 = vsel %vm540, 1, 0
  %v557 = vsel %vm541, 1, 0
  %v558 = vsel %vm542, 1, 0
  %v559 = vsel %vm543, 1, 0
  %v560 = vsel %vm544, 1, 0
  %v561 = vsel %vm545, 1, 0
  %v562 = vcvt.s32.f32 %v546
  %v563 = vcvt.s32.f32 %v547
  %v564 = vcvt.s32.f32 %v548
  %v565 = vcvt.s32.f32 %v549
  %v566 = vcvt.s32.f32 %v550
  %v567 = vcvt.s32.f32 %v551
  %v568 = vcvt.s32.f32 %v552
  %v569 = vcvt.s32.f32 %v553
  %v570 = vcvt.s32.f32 %v554
  %v571 = vcvt.s32.f32 %v555
  %v572 = vcvt.s32.f32 %v556
  %v573 = vcvt.s32.f32 %v557
  %v574 = vcvt.s32.f32 %v558
  %v575 = vcvt.s32.f32 %v559
  %v576 = vcvt.s32.f32 %v560
  %v577 = vcvt.s32.f32 %v561
  %v578 = vadd.f32 %v396, %v398
  %v579 = vadd.f32 %v578, %v400
  %v580 = vadd.f32 %v579, %v402
  %v581 = vadd.f32 %v580, %v404
  %v582 = vadd.f32 %v581, %v406
  %v583 = vadd.f32 %v582, %v408
  %v584 = vadd.f32 %v583, %v410
  %v585 = vadd.f32 %v584, %v412
  %v586 = vadd.f32 %v585, %v414
  %v587 = vadd.f32 %v586, %v416
  %v588 = vadd.f32 %v587, %v418
  %v589 = vadd.f32 %v588, %v420
  %v590 = vadd.f32 %v589, %v422
  %v591 = vadd.f32 %v590, %v424
  %v592 = vadd.f32 %v591, %v426
  %v593 = vrot.slane %v592, 4
  %v594 = vadd.f32 %v592, %v593
  %v595 = vrot.slane %v594, 2
  %v596 = vadd.f32 %v594, %v595
  %v597 = vrot.slane %v596, 1
  %v598 = vadd.f32 %v596, %v597
  %v599 = vmul.f32 %v396, %v562
  %v600 = vmul.f32 %v398, %v563
  %v601 = vmul.f32 %v400, %v564
  %v602 = vmul.f32 %v402, %v565
  %v603 = vmul.f32 %v404, %v566
  %v604 = vmul.f32 %v406, %v567
  %v605 = vmul.f32 %v408, %v568
  %v606 = vmul.f32 %v410, %v569
  %v607 = vmul.f32 %v412, %v570
  %v608 = vmul.f32 %v414, %v571
  %v609 = vmul.f32 %v416, %v572
  %v610 = vmul.f32 %v418, %v573
  %v611 = vmul.f32 %v420, %v574
  %v612 = vmul.f32 %v422, %v575
  %v613 = vmul.f32 %v424, %v576
  %v614 = vmul.f32 %v426, %v577
  %v615 = vadd.f32 %v599, %v600
  %v616 = vadd.f32 %v615, %v601
  %v617 = vadd.f32 %v616, %v602
  %v618 = vadd.f32 %v617, %v603
  %v619 = vadd.f32 %v618, %v604
  %v620 = vadd.f32 %v619, %v605
  %v621 = vadd.f32 %v620, %v606
  %v622 = vadd.f32 %v621, %v607
  %v623 = vadd.f32 %v622, %v608
  %v624 = vadd.f32 %v623, %v609
  %v625 = vadd.f32 %v624, %v610
  %v626 = vadd.f32 %v625, %v611
  %v627 = vadd.f32 %v626, %v612
  %v628 = vadd.f32 %v627, %v613
  %v629 = vadd.f32 %v628, %v614
  %v630 = vrot.slane %v629, 4
  %v631 = vadd.f32 %v629, %v630
  %v632 = vrot.slane %v631, 2
  %v633 = vadd.f32 %v631, %v632
  %v634 = vrot.slane %v633, 1
  %v635 = vadd.f32 %v633, %v634
  %v636 = vsub.f32 %v598, %v635
  %v637 = vadd.f32 %v396, %v636
  %v638 = vadd.f32 %v398, %v636
  %v639 = vadd.f32 %v400, %v636
  %v640 = vadd.f32 %v402, %v636
  %v641 = vadd.f32 %v404, %v636
  %v642 = vadd.f32 %v406, %v636
  %v643 = vadd.f32 %v408, %v636
  %v644 = vadd.f32 %v410, %v636
  %v645 = vadd.f32 %v412, %v636
  %v646 = vadd.f32 %v414, %v636
  %v647 = vadd.f32 %v416, %v636
  %v648 = vadd.f32 %v418, %v636
  %v649 = vadd.f32 %v420, %v636
  %v650 = vadd.f32 %v422, %v636
  %v651 = vadd.f32 %v424, %v636
  %v652 = vadd.f32 %v426, %v636
  %v653 = vmax.f32 %v637, 1e-30
  %v654 = vmax.f32 %v638, 1e-30
  %v655 = vmax.f32 %v639, 1e-30
  %v656 = vmax.f32 %v640, 1e-30
  %v657 = vmax.f32 %v641, 1e-30
  %v658 = vmax.f32 %v642, 1e-30
  %v659 = vmax.f32 %v643, 1e-30
  %v660 = vmax.f32 %v644, 1e-30
  %v661 = vmax.f32 %v645, 1e-30
  %v662 = vmax.f32 %v646, 1e-30
  %v663 = vmax.f32 %v647, 1e-30
  %v664 = vmax.f32 %v648, 1e-30
  %v665 = vmax.f32 %v649, 1e-30
  %v666 = vmax.f32 %v650, 1e-30
  %v667 = vmax.f32 %v651, 1e-30
  %v668 = vmax.f32 %v652, 1e-30
  %v669 = vlog2.pop %v653
  %v670 = vmul.f32 %v669, 0.6931472
  %v671 = vlog2.pop %v654
  %v672 = vmul.f32 %v671, 0.6931472
  %v673 = vlog2.pop %v655
  %v674 = vmul.f32 %v673, 0.6931472
  %v675 = vlog2.pop %v656
  %v676 = vmul.f32 %v675, 0.6931472
  %v677 = vlog2.pop %v657
  %v678 = vmul.f32 %v677, 0.6931472
  %v679 = vlog2.pop %v658
  %v680 = vmul.f32 %v679, 0.6931472
  %v681 = vlog2.pop %v659
  %v682 = vmul.f32 %v681, 0.6931472
  %v683 = vlog2.pop %v660
  %v684 = vmul.f32 %v683, 0.6931472
  %v685 = vlog2.pop %v661
  %v686 = vmul.f32 %v685, 0.6931472
  %v687 = vlog2.pop %v662
  %v688 = vmul.f32 %v687, 0.6931472
  %v689 = vlog2.pop %v663
  %v690 = vmul.f32 %v689, 0.6931472
  %v691 = vlog2.pop %v664
  %v692 = vmul.f32 %v691, 0.6931472
  %v693 = vlog2.pop %v665
  %v694 = vmul.f32 %v693, 0.6931472
  %v695 = vlog2.pop %v666
  %v696 = vmul.f32 %v695, 0.6931472
  %v697 = vlog2.pop %v667
  %v698 = vmul.f32 %v697, 0.6931472
  %v699 = vlog2.pop %v668
  %v700 = vmul.f32 %v699, 0.6931472
  %v701 = vsub.f32 %v379, %v670
  %v702 = vsub.f32 %v380, %v672
  %v703 = vsub.f32 %v381, %v674
  %v704 = vsub.f32 %v382, %v676
  %v705 = vsub.f32 %v383, %v678
  %v706 = vsub.f32 %v384, %v680
  %v707 = vsub.f32 %v385, %v682
  %v708 = vsub.f32 %v386, %v684
  %v709 = vsub.f32 %v387, %v686
  %v710 = vsub.f32 %v388, %v688
  %v711 = vsub.f32 %v389, %v690
  %v712 = vsub.f32 %v390, %v692
  %v713 = vsub.f32 %v391, %v694
  %v714 = vsub.f32 %v392, %v696
  %v715 = vsub.f32 %v393, %v698
  %v716 = vsub.f32 %v394, %v700
  %v717 = vld [vmem:[%s6] sm:$0x1]
  %v718 = vsub.f32 %v717, %v372
  %v719 = vmul.f32 %v718, 1.442695
  %v720 = vpow.pop %v719
  %v721 = vadd.f32 %v720, %v636
  %v722 = vmax.f32 %v721, 1e-30
  %v723 = vlog2.pop %v722
  %v724 = vmul.f32 %v723, 0.6931472
  %v725 = vsub.f32 %v718, %v724
  %v726 = vadd.f32 %v562, %v563
  %v727 = vadd.f32 %v726, %v564
  %v728 = vadd.f32 %v727, %v565
  %v729 = vadd.f32 %v728, %v566
  %v730 = vadd.f32 %v729, %v567
  %v731 = vadd.f32 %v730, %v568
  %v732 = vadd.f32 %v731, %v569
  %v733 = vadd.f32 %v732, %v570
  %v734 = vadd.f32 %v733, %v571
  %v735 = vadd.f32 %v734, %v572
  %v736 = vadd.f32 %v735, %v573
  %v737 = vadd.f32 %v736, %v574
  %v738 = vadd.f32 %v737, %v575
  %v739 = vadd.f32 %v738, %v576
  %v740 = vadd.f32 %v739, %v577
  %v741 = vrot.slane %v740, 4
  %v742 = vadd.f32 %v740, %v741
  %v743 = vrot.slane %v742, 2
  %v744 = vadd.f32 %v742, %v743
  %v745 = vrot.slane %v744, 1
  %v746 = vadd.f32 %v744, %v745
  %v747 = vsub.f32 %v746, %v349
  %v748 = vmul.f32 %v562, %v701
  %v749 = vmul.f32 %v563, %v702
  %v750 = vmul.f32 %v564, %v703
  %v751 = vmul.f32 %v565, %v704
  %v752 = vmul.f32 %v566, %v705
  %v753 = vmul.f32 %v567, %v706
  %v754 = vmul.f32 %v568, %v707
  %v755 = vmul.f32 %v569, %v708
  %v756 = vmul.f32 %v570, %v709
  %v757 = vmul.f32 %v571, %v710
  %v758 = vmul.f32 %v572, %v711
  %v759 = vmul.f32 %v573, %v712
  %v760 = vmul.f32 %v574, %v713
  %v761 = vmul.f32 %v575, %v714
  %v762 = vmul.f32 %v576, %v715
  %v763 = vmul.f32 %v577, %v716
  %v764 = vadd.f32 %v748, %v749
  %v765 = vadd.f32 %v764, %v750
  %v766 = vadd.f32 %v765, %v751
  %v767 = vadd.f32 %v766, %v752
  %v768 = vadd.f32 %v767, %v753
  %v769 = vadd.f32 %v768, %v754
  %v770 = vadd.f32 %v769, %v755
  %v771 = vadd.f32 %v770, %v756
  %v772 = vadd.f32 %v771, %v757
  %v773 = vadd.f32 %v772, %v758
  %v774 = vadd.f32 %v773, %v759
  %v775 = vadd.f32 %v774, %v760
  %v776 = vadd.f32 %v775, %v761
  %v777 = vadd.f32 %v776, %v762
  %v778 = vadd.f32 %v777, %v763
  %v779 = vrot.slane %v778, 4
  %v780 = vadd.f32 %v778, %v779
  %v781 = vrot.slane %v780, 2
  %v782 = vadd.f32 %v780, %v781
  %v783 = vrot.slane %v782, 1
  %v784 = vadd.f32 %v782, %v783
  %v785 = vmul.f32 %v349, %v725
  %v786 = vsub.f32 %v784, %v785
  %vm787 = vcmp.gt.f32.partialorder %v747, 0.5
  %v788 = vsel %vm787, %v747, 1.0
  %v789 = vrcp.pop %v788
  %v790 = vmul.f32 %v786, %v789
  %v791 = vsel %vm787, %v790, 0.0
  %v792 = vmul.f32 %v791, -1.0
  %v793 = vmul.f32 %v792, %v349
  %794 = vst [vmem:[%s7] sm:$0x1] %v793
  // Predicated region
  $region30: #{fn.1} parent=0 // pred_check
    _
  $region31: #{fn.1} parent=0 // pred_check_branch
    %796 = sbr.rel (0) target = $region33
  $region32: #{fn.1} parent=0 // pred_region
    _
  $region33: #{fn.1} parent=0 // pred_fallthru
    _
  // Predicated region
  $region34: #{fn.1} parent=0 // pred_check
    _
  $region35: #{fn.1} parent=0 // pred_check_branch
    %798 = sbr.rel (0) target = $region37
  $region36: #{fn.1} parent=0 // pred_region
    _
  $region37: #{fn.1} parent=0 // pred_fallthru
    _

</llo_original>
